<compile_context>
chip_gen: v7x
topology: tpu7x:2x2x1
jax: 0.10.0
libtpu: 0.0.40
codegen_flags: <defaults>
</compile_context>

<pallas_src>
import functools
import math

import jax
import jax.numpy as jnp
from jax.experimental import pallas as pl
from jax.experimental.pallas import tpu as pltpu


# ----------------------------------------------------------------------------
# Helpers
# ----------------------------------------------------------------------------
def _tile(dim, cap, align):
    """Largest multiple of `align` that divides `dim` and is <= cap.

    Returns the full dim if dim <= cap (a full-dim block is always
    layout-legal) or if no aligned divisor exists.
    """
    if dim <= cap:
        return dim
    t = cap - cap % align
    while t >= align:
        if dim % t == 0:
            return t
        t -= align
    # TODO(synk): emit masked edge tiles for ragged dims instead of a
    # full-dim fallback (a full-dim block can exceed VMEM for very long seqs).
    return dim


def _vmem_limit():
    """Per-generation scoped-VMEM budget (v5e/v6e: ~96 MiB, v7x: ~48 MiB)."""
    try:
        cap = int(pltpu.get_tpu_info().vmem_capacity_bytes)
        return int(min(max(cap - 16 * 1024 * 1024, 32 * 1024 * 1024),
                       96 * 1024 * 1024))
    except Exception:  # pragma: no cover - conservative fallback
        return 48 * 1024 * 1024


# ----------------------------------------------------------------------------
# Fused QKV projection with RoPE epilogue
#   grid = (B, S//tm, 3[q,k,v], H//tn, K//tk);  K (reduction) innermost.
#   Output is (3, B*S, H) with RoPE already applied to the Q and K planes.
# ----------------------------------------------------------------------------
def _qkv_rope_kernel(x_ref, w_ref, cos_ref, sin_ref, o_ref, acc_ref, *,
                     head_dim):
    r = pl.program_id(2)          # 0 = Q, 1 = K, 2 = V
    kk = pl.program_id(4)

    @pl.when(kk == 0)
    def _():
        acc_ref[...] = jnp.zeros_like(acc_ref)

    acc_ref[...] += jnp.dot(x_ref[...], w_ref[0],
                            preferred_element_type=jnp.float32)

    is_last = kk == pl.num_programs(4) - 1

    # Epilogue: apply RoPE to Q and K tiles (once, here - never in the flash
    # inner loop).  The column tile is whole-head aligned, so the rotate_half
    # partner column is always inside the tile.
    @pl.when(is_last & (r < 2))
    def _():
        acc = acc_ref[...]
        tn = acc.shape[1]
        half = head_dim // 2
        pieces = []
        for h in range(tn // head_dim):          # static Python loop
            blk = acc[:, h * head_dim:(h + 1) * head_dim]
            pieces.append(-blk[:, half:])
            pieces.append(blk[:, :half])
        rot = jnp.concatenate(pieces, axis=1)    # rotate_half(acc), head-wise
        o_ref[0] = (acc * cos_ref[...] + rot * sin_ref[...]).astype(o_ref.dtype)

    @pl.when(is_last & (r == 2))
    def _():
        o_ref[0] = acc_ref[...].astype(o_ref.dtype)


def _qkv_projection(x2d, w_qkv, cos_h, sin_h, *, batch, seq, head_dim,
                    tm_cap=256, tn_cap=256, tk_cap=512):
    M, K = x2d.shape
    _, _, H = w_qkv.shape                       # (3, H, H)
    assert M == batch * seq

    tm = _tile(seq, tm_cap, 8)                  # row tiles stay inside a batch
    # Column tile = whole heads only (rotate_half partner must stay in-tile).
    heads_per_tile = _tile(H // head_dim, max(1, tn_cap // head_dim), 1)
    tn = heads_per_tile * head_dim
    tk = _tile(K, tk_cap, 128)
    sb = seq // tm                              # seq blocks per batch

    kernel = functools.partial(_qkv_rope_kernel, head_dim=head_dim)
    return pl.pallas_call(
        kernel,
        out_shape=jax.ShapeDtypeStruct((3, M, H), x2d.dtype),
        grid=(batch, sb, 3, H // tn, K // tk),
        in_specs=[
            # x tile is independent of (r, c, k-change only) -> reused across
            # the whole 3H output row.
            pl.BlockSpec((tm, tk), lambda b, s, r, c, k: (b * sb + s, k)),
            pl.BlockSpec((1, tk, tn), lambda b, s, r, c, k: (r, k, c)),
            pl.BlockSpec((tm, tn), lambda b, s, r, c, k: (s, c)),   # cos
            pl.BlockSpec((tm, tn), lambda b, s, r, c, k: (s, c)),   # sin
        ],
        out_specs=pl.BlockSpec((1, tm, tn),
                               lambda b, s, r, c, k: (r, b * sb + s, c)),
        scratch_shapes=[pltpu.VMEM((tm, tn), jnp.float32)],
        compiler_params=pltpu.CompilerParams(
            dimension_semantics=("parallel", "parallel", "parallel",
                                 "parallel", "arbitrary"),
            vmem_limit_bytes=_vmem_limit()),
    )(x2d, w_qkv, cos_h, sin_h)


# ----------------------------------------------------------------------------
# Plain streamed matmul (output projection)
# ----------------------------------------------------------------------------
def _matmul_kernel(x_ref, w_ref, o_ref, acc_ref):
    @pl.when(pl.program_id(2) == 0)
    def _():
        acc_ref[...] = jnp.zeros_like(acc_ref)

    acc_ref[...] += jnp.dot(x_ref[...], w_ref[...],
                            preferred_element_type=jnp.float32)

    @pl.when(pl.program_id(2) == pl.num_programs(2) - 1)
    def _():
        o_ref[...] = acc_ref[...].astype(o_ref.dtype)


def _matmul(x, w, *, tm_cap=256, tn_cap=256, tk_cap=512):
    M, K = x.shape
    K2, N = w.shape
    assert K == K2
    tm = _tile(M, tm_cap, 8)
    tn = _tile(N, tn_cap, 128)
    tk = _tile(K, tk_cap, 128)
    return pl.pallas_call(
        _matmul_kernel,
        out_shape=jax.ShapeDtypeStruct((M, N), x.dtype),
        grid=(M // tm, N // tn, K // tk),
        in_specs=[
            pl.BlockSpec((tm, tk), lambda i, j, k: (i, k)),
            pl.BlockSpec((tk, tn), lambda i, j, k: (k, j)),
        ],
        out_specs=pl.BlockSpec((tm, tn), lambda i, j, k: (i, j)),
        scratch_shapes=[pltpu.VMEM((tm, tn), jnp.float32)],
        compiler_params=pltpu.CompilerParams(
            dimension_semantics=("parallel", "parallel", "arbitrary"),
            vmem_limit_bytes=_vmem_limit()),
    )(x, w)


# ----------------------------------------------------------------------------
# Flash attention (causal).  RoPE + scale already applied upstream.
#   grid = (B*heads, q_tiles, kv_tiles), kv reduction innermost ("arbitrary").
# ----------------------------------------------------------------------------
_NEG_BIG = -1e30  # large-negative mask value (avoids -inf arithmetic / NaNs)


def _flash_kernel(q_ref, k_ref, v_ref, o_ref, m_ref, l_ref, acc_ref):
    qi = pl.program_id(1)
    ki = pl.program_id(2)
    tq = q_ref.shape[1]
    tk = k_ref.shape[1]

    @pl.when(ki == 0)
    def _():
        m_ref[...] = jnp.full_like(m_ref, _NEG_BIG)
        l_ref[...] = jnp.zeros_like(l_ref)
        acc_ref[...] = jnp.zeros_like(acc_ref)

    q_start = qi * tq
    k_start = ki * tk
    is_valid = k_start < q_start + tq         # tile has >= 1 causal pair
    on_diag = k_start + tk - 1 > q_start      # tile crosses the diagonal

    def update(masked):
        k = k_ref[0]
        v = v_ref[0]
        # Contract on the head dim directly (no K transpose / XLU work).
        s = jax.lax.dot_general(q_ref[0], k, (((1,), (1,)), ((), ())),
                                preferred_element_type=jnp.float32)  # (tq, tk)
        if masked:
            q_pos = q_start + jax.lax.broadcasted_iota(jnp.int32, (tq, 1), 0)
            k_pos = k_start + jax.lax.broadcasted_iota(jnp.int32, (1, tk), 1)
            s = jnp.where(q_pos >= k_pos, s, _NEG_BIG)
        m_prev = m_ref[...]
        m_new = jnp.maximum(m_prev, jnp.max(s, axis=-1, keepdims=True))
        alpha = jnp.exp(m_prev - m_new)
        p = jnp.exp(s - m_new)
        l_ref[...] = alpha * l_ref[...] + jnp.sum(p, axis=-1, keepdims=True)
        acc_ref[...] = alpha * acc_ref[...] + jnp.dot(
            p.astype(v.dtype), v, preferred_element_type=jnp.float32)
        m_ref[...] = m_new

    # Fast path: fully-past kv tiles skip the causal mask entirely.
    @pl.when(is_valid & jnp.logical_not(on_diag))
    def _():
        update(False)

    @pl.when(is_valid & on_diag)
    def _():
        update(True)

    @pl.when(ki == pl.num_programs(2) - 1)
    def _():
        # Exact normalization (once per q tile; negligible cost).
        o_ref[0] = (acc_ref[...] / l_ref[...]).astype(o_ref.dtype)


def _flash_attention(q, k, v, *, tq_cap=128, tk_cap=256):
    BH, S, hd = q.shape
    tq = _tile(S, tq_cap, 8)
    tk = _tile(S, tk_cap, 8)

    def kv_index(b, i, j):
        # Clamp the kv block so causally-skipped steps revisit the previous
        # block -> no DMA for the upper-triangular half.
        last_valid = ((i + 1) * tq - 1) // tk
        return (b, jnp.minimum(j, last_valid), 0)

    return pl.pallas_call(
        _flash_kernel,
        out_shape=jax.ShapeDtypeStruct((BH, S, hd), q.dtype),
        grid=(BH, S // tq, S // tk),
        in_specs=[
            pl.BlockSpec((1, tq, hd), lambda b, i, j: (b, i, 0)),   # q
            pl.BlockSpec((1, tk, hd), kv_index),                    # k
            pl.BlockSpec((1, tk, hd), kv_index),                    # v
        ],
        out_specs=pl.BlockSpec((1, tq, hd), lambda b, i, j: (b, i, 0)),
        scratch_shapes=[
            pltpu.VMEM((tq, 1), jnp.float32),      # running max m
            pltpu.VMEM((tq, 1), jnp.float32),      # running sum l
            pltpu.VMEM((tq, hd), jnp.float32),     # output accumulator
        ],
        compiler_params=pltpu.CompilerParams(
            dimension_semantics=("parallel", "parallel", "arbitrary"),
            vmem_limit_bytes=_vmem_limit()),
    )(q, k, v)


# ----------------------------------------------------------------------------
# Full forward pass (matches Attention.forward)
# ----------------------------------------------------------------------------
def attention_forward(x, wq_t, wk_t, wv_t, wo_t, cos, sin, num_heads):
    """x: (B, S, H); w*_t: (H_in, H_out) (PyTorch W.T); cos/sin: (S, head_dim)."""
    B, S, H = x.shape
    hd = H // num_heads
    scale = 1.0 / math.sqrt(hd)

    # Fused QKV weight; softmax scale folded into the Q columns (commutes with
    # the RoPE rotation applied in the kernel epilogue).
    w_qkv = jnp.stack([wq_t * scale, wk_t, wv_t], axis=0)        # (3, H, H)

    # cos/sin repeated per head so the QKV epilogue sees (tm, tn) tiles that
    # line up 1:1 with head-aligned output columns.
    cos_h = jnp.tile(cos.astype(jnp.float32), (1, num_heads))    # (S, H)
    sin_h = jnp.tile(sin.astype(jnp.float32), (1, num_heads))    # (S, H)

    x2d = x.reshape(B * S, H)
    qkv = _qkv_projection(x2d, w_qkv, cos_h, sin_h,
                          batch=B, seq=S, head_dim=hd)  # (3, B*S, H), Q/K rotated

    def to_heads(t):                                    # (B*S, H) -> (B*nh, S, hd)
        return (t.reshape(B, S, num_heads, hd)
                 .transpose(0, 2, 1, 3)
                 .reshape(B * num_heads, S, hd))

    # TODO(synk): for production head_dim >= 128 fold these head-split
    # transposes into the flash / O-proj BlockSpecs to save HBM round trips.
    q = to_heads(qkv[0])
    k = to_heads(qkv[1])
    v = to_heads(qkv[2])

    # Leading parallel extent B*num_heads is even -> clean megacore split on v7x.
    attn = _flash_attention(q, k, v)                    # (B*nh, S, hd)

    attn2d = (attn.reshape(B, num_heads, S, hd)
                  .transpose(0, 2, 1, 3)
                  .reshape(B * S, H))
    out2d = _matmul(attn2d, wo_t)                       # (B*S, H)
    return out2d.reshape(B, S, H)


# ----------------------------------------------------------------------------
# Pure-JAX reference (mirrors the PyTorch forward exactly)
# ----------------------------------------------------------------------------
def reference(x, wq_t, wk_t, wv_t, wo_t, cos_cache, sin_cache, position_ids,
              num_heads):
    B, S, H = x.shape
    hd = H // num_heads

    def split_heads(t):
        return t.reshape(B, S, num_heads, hd).transpose(0, 2, 1, 3)

    q = split_heads(x @ wq_t)
    k = split_heads(x @ wk_t)
    v = split_heads(x @ wv_t)

    cos = cos_cache[position_ids][:, None, :, :]   # (1, 1, S, hd)
    sin = sin_cache[position_ids][:, None, :, :]

    def rotate_half(t):
        t1, t2 = t[..., : hd // 2], t[..., hd // 2:]
        return jnp.concatenate([-t2, t1], axis=-1)

    q = q * cos + rotate_half(q) * sin
    k = k * cos + rotate_half(k) * sin

    s = jnp.einsum('bhqd,bhkd->bhqk', q, k) / math.sqrt(hd)
    mask = jnp.tril(jnp.ones((S, S), dtype=bool))
    s = jnp.where(mask, s, -jnp.inf)
    p = jax.nn.softmax(s, axis=-1)
    o = jnp.einsum('bhqk,bhkd->bhqd', p, v)
    o = o.transpose(0, 2, 1, 3).reshape(B, S, H)
    return o @ wo_t


# ----------------------------------------------------------------------------
# Main
# ----------------------------------------------------------------------------
if __name__ == "__main__":
    B, S, H, NUM_HEADS = 2, 8, 32, 4
    HEAD_DIM = H // NUM_HEADS
    MAX_POS = 1024  # config.sequence_length / max_position_embeddings

    key = jax.random.PRNGKey(0)
    kx, kq, kk, kv, ko = jax.random.split(key, 5)

    x = jax.random.normal(kx, (B, S, H), dtype=jnp.float32)

    # nn.Linear weights are (out, in); we pass W.T = (in, out) to the kernels.
    def make_w(k):
        w = jax.random.normal(k, (H, H), dtype=jnp.float32) * 0.05
        return w.T

    wq_t = make_w(kq)
    wk_t = make_w(kk)
    wv_t = make_w(kv)
    wo_t = make_w(ko)

    # RotaryEmbedding cos/sin cache (head_dim, base=10000)
    inv_freq = 1.0 / (10000.0 ** (jnp.arange(0, HEAD_DIM, 2, dtype=jnp.float32)
                                  / HEAD_DIM))
    t = jnp.arange(MAX_POS, dtype=jnp.float32)
    freqs = jnp.einsum('i,j->ij', t, inv_freq)               # (MAX_POS, hd/2)
    emb = jnp.concatenate([freqs, freqs], axis=-1)           # (MAX_POS, hd)
    cos_cache = jnp.cos(emb)
    sin_cache = jnp.sin(emb)

    position_ids = jnp.arange(S, dtype=jnp.int32)[None, :]   # (1, S)
    cos_g = cos_cache[position_ids[0]]                       # (S, hd)
    sin_g = sin_cache[position_ids[0]]                       # (S, hd)

    out = attention_forward(x, wq_t, wk_t, wv_t, wo_t, cos_g, sin_g, NUM_HEADS)
    out = jax.block_until_ready(out)

    ref = reference(x, wq_t, wk_t, wv_t, wo_t, cos_cache, sin_cache,
                    position_ids, NUM_HEADS)

    assert out.shape == (B, S, H)
    assert jnp.allclose(out, ref, rtol=1e-3, atol=1e-4), (
        f"max abs err {jnp.max(jnp.abs(out - ref))}")

    print("KERNEL_OK")
</pallas_src>

<mosaic_0001>
module attributes {stable_mosaic.version = 11 : i64} {
  func.func @_qkv_rope_kernel(%arg0: i32, %arg1: i32, %arg2: i32, %arg3: i32, %arg4: i32, %arg5: memref<8x32xf32, #tpu.memory_space<vmem>>, %arg6: memref<1x32x32xf32, #tpu.memory_space<vmem>>, %arg7: memref<8x32xf32, #tpu.memory_space<vmem>>, %arg8: memref<8x32xf32, #tpu.memory_space<vmem>>, %arg9: memref<1x8x32xf32, #tpu.memory_space<vmem>>, %arg10: memref<8x32xf32, #tpu.memory_space<vmem>>) attributes {dimension_semantics = [#tpu.dimension_semantics<parallel>, #tpu.dimension_semantics<parallel>, #tpu.dimension_semantics<parallel>, #tpu.dimension_semantics<parallel>, #tpu.dimension_semantics<arbitrary>], iteration_bounds = array<i64: 2, 1, 3, 1, 1>, scalar_prefetch = 0 : i64, scratch_operands = 1 : i64, tpu.core_type = #tpu.core_type<tc>, window_params = [{transform_indices = @transform_0, window_bounds = array<i64: 8, 32>}, {transform_indices = @transform_1, window_bounds = array<i64: 1, 32, 32>}, {transform_indices = @transform_2, window_bounds = array<i64: 8, 32>}, {transform_indices = @transform_3, window_bounds = array<i64: 8, 32>}, {transform_indices = @transform_4, window_bounds = array<i64: 1, 8, 32>}]} {
    %c0_i32 = arith.constant 0 : i32
    %0 = arith.cmpi eq, %arg4, %c0_i32 : i32
    %1 = arith.extui %0 : i1 to i32
    %c0_i32_0 = arith.constant 0 : i32
    %2 = arith.cmpi ne, %1, %c0_i32_0 : i32
    scf.if %2 {
      %cst_13 = arith.constant 0.000000e+00 : f32
      %19 = vector.broadcast %cst_13 : f32 to vector<8x32xf32>
      %c0_14 = arith.constant 0 : index
      %c0_15 = arith.constant 0 : index
      %20 = vector.load %arg10[%c0_14, %c0_15] : memref<8x32xf32, #tpu.memory_space<vmem>>, vector<8x32xf32>
      tpu.vector_store %arg10[%c0_14, %c0_15], %19 {strides = array<i32>} : memref<8x32xf32, #tpu.memory_space<vmem>>, vector<8x32xf32>,
    } else {
    }
    %c0 = arith.constant 0 : index
    %c0_1 = arith.constant 0 : index
    %3 = vector.load %arg10[%c0, %c0_1] : memref<8x32xf32, #tpu.memory_space<vmem>>, vector<8x32xf32>
    %c0_2 = arith.constant 0 : index
    %c0_3 = arith.constant 0 : index
    %4 = vector.load %arg5[%c0_2, %c0_3] : memref<8x32xf32, #tpu.memory_space<vmem>>, vector<8x32xf32>
    %c0_4 = arith.constant 0 : index
    %c0_5 = arith.constant 0 : index
    %c0_6 = arith.constant 0 : index
    %5 = vector.load %arg6[%c0_4, %c0_5, %c0_6] : memref<1x32x32xf32, #tpu.memory_space<vmem>>, vector<1x32x32xf32>
    %6 = vector.shape_cast %5 : vector<1x32x32xf32> to vector<32x32xf32>
    %cst = arith.constant dense<0.000000e+00> : vector<8x32xf32>
    %7 = tpu.matmul %4, %6, %cst {dimension_numbers = #tpu.dot_dimension_numbers<[1], [0], [0], [1], [0, 0, 1, 1], [], []>} : vector<8x32xf32>, vector<32x32xf32>, vector<8x32xf32> -> vector<8x32xf32>
    %8 = arith.addf %3, %7 : vector<8x32xf32>
    %c0_7 = arith.constant 0 : index
    %c0_8 = arith.constant 0 : index
    %9 = vector.load %arg10[%c0_7, %c0_8] : memref<8x32xf32, #tpu.memory_space<vmem>>, vector<8x32xf32>
    tpu.vector_store %arg10[%c0_7, %c0_8], %8 {strides = array<i32>} : memref<8x32xf32, #tpu.memory_space<vmem>>, vector<8x32xf32>,
    %c0_i32_9 = arith.constant 0 : i32
    %10 = arith.cmpi eq, %arg4, %c0_i32_9 : i32
    %c2_i32 = arith.constant 2 : i32
    %11 = arith.cmpi slt, %arg2, %c2_i32 : i32
    %12 = arith.andi %10, %11 : i1
    %13 = arith.extui %12 : i1 to i32
    %c0_i32_10 = arith.constant 0 : i32
    %14 = arith.cmpi ne, %13, %c0_i32_10 : i32
    scf.if %14 {
      %c0_13 = arith.constant 0 : index
      %c0_14 = arith.constant 0 : index
      %19 = vector.load %arg10[%c0_13, %c0_14] : memref<8x32xf32, #tpu.memory_space<vmem>>, vector<8x32xf32>
      %20 = vector.extract_strided_slice %19 {offsets = [0, 0], sizes = [8, 8], strides = [1, 1]} : vector<8x32xf32> to vector<8x8xf32>
      %21 = vector.extract_strided_slice %20 {offsets = [0, 4], sizes = [8, 4], strides = [1, 1]} : vector<8x8xf32> to vector<8x4xf32>
      %cst_15 = arith.constant 0.000000e+00 : f32
      %22 = vector.broadcast %cst_15 : f32 to vector<8x4xf32>
      %23 = arith.subf %22, %21 : vector<8x4xf32>
      %24 = vector.extract_strided_slice %20 {offsets = [0, 0], sizes = [8, 4], strides = [1, 1]} : vector<8x8xf32> to vector<8x4xf32>
      %25 = vector.extract_strided_slice %19 {offsets = [0, 8], sizes = [8, 8], strides = [1, 1]} : vector<8x32xf32> to vector<8x8xf32>
      %26 = vector.extract_strided_slice %25 {offsets = [0, 4], sizes = [8, 4], strides = [1, 1]} : vector<8x8xf32> to vector<8x4xf32>
      %cst_16 = arith.constant 0.000000e+00 : f32
      %27 = vector.broadcast %cst_16 : f32 to vector<8x4xf32>
      %28 = arith.subf %27, %26 : vector<8x4xf32>
      %29 = vector.extract_strided_slice %25 {offsets = [0, 0], sizes = [8, 4], strides = [1, 1]} : vector<8x8xf32> to vector<8x4xf32>
      %30 = vector.extract_strided_slice %19 {offsets = [0, 16], sizes = [8, 8], strides = [1, 1]} : vector<8x32xf32> to vector<8x8xf32>
      %31 = vector.extract_strided_slice %30 {offsets = [0, 4], sizes = [8, 4], strides = [1, 1]} : vector<8x8xf32> to vector<8x4xf32>
      %cst_17 = arith.constant 0.000000e+00 : f32
      %32 = vector.broadcast %cst_17 : f32 to vector<8x4xf32>
      %33 = arith.subf %32, %31 : vector<8x4xf32>
      %34 = vector.extract_strided_slice %30 {offsets = [0, 0], sizes = [8, 4], strides = [1, 1]} : vector<8x8xf32> to vector<8x4xf32>
      %35 = vector.extract_strided_slice %19 {offsets = [0, 24], sizes = [8, 8], strides = [1, 1]} : vector<8x32xf32> to vector<8x8xf32>
      %36 = vector.extract_strided_slice %35 {offsets = [0, 4], sizes = [8, 4], strides = [1, 1]} : vector<8x8xf32> to vector<8x4xf32>
      %cst_18 = arith.constant 0.000000e+00 : f32
      %37 = vector.broadcast %cst_18 : f32 to vector<8x4xf32>
      %38 = arith.subf %37, %36 : vector<8x4xf32>
      %39 = vector.extract_strided_slice %35 {offsets = [0, 0], sizes = [8, 4], strides = [1, 1]} : vector<8x8xf32> to vector<8x4xf32>
      %40 = tpu.concatenate %23, %24, %28, %29, %33, %34, %38, %39 in 1 : vector<8x4xf32>, vector<8x4xf32>, vector<8x4xf32>, vector<8x4xf32>, vector<8x4xf32>, vector<8x4xf32>, vector<8x4xf32>, vector<8x4xf32> -> vector<8x32xf32>
      %c0_19 = arith.constant 0 : index
      %c0_20 = arith.constant 0 : index
      %41 = vector.load %arg7[%c0_19, %c0_20] : memref<8x32xf32, #tpu.memory_space<vmem>>, vector<8x32xf32>
      %42 = arith.mulf %19, %41 : vector<8x32xf32>
      %c0_21 = arith.constant 0 : index
      %c0_22 = arith.constant 0 : index
      %43 = vector.load %arg8[%c0_21, %c0_22] : memref<8x32xf32, #tpu.memory_space<vmem>>, vector<8x32xf32>
      %44 = arith.mulf %40, %43 : vector<8x32xf32>
      %45 = arith.addf %42, %44 : vector<8x32xf32>
      %c0_23 = arith.constant 0 : index
      %c0_24 = arith.constant 0 : index
      %c0_25 = arith.constant 0 : index
      %46 = vector.load %arg9[%c0_23, %c0_24, %c0_25] : memref<1x8x32xf32, #tpu.memory_space<vmem>>, vector<1x8x32xf32>
      %47 = vector.shape_cast %46 : vector<1x8x32xf32> to vector<8x32xf32>
      %48 = vector.shape_cast %45 : vector<8x32xf32> to vector<1x8x32xf32>
      tpu.vector_store %arg9[%c0_23, %c0_24, %c0_25], %48 {strides = array<i32>} : memref<1x8x32xf32, #tpu.memory_space<vmem>>, vector<1x8x32xf32>,
    } else {
    }
    %c2_i32_11 = arith.constant 2 : i32
    %15 = arith.cmpi eq, %arg2, %c2_i32_11 : i32
    %16 = arith.andi %10, %15 : i1
    %17 = arith.extui %16 : i1 to i32
    %c0_i32_12 = arith.constant 0 : i32
    %18 = arith.cmpi ne, %17, %c0_i32_12 : i32
    scf.if %18 {
      %c0_13 = arith.constant 0 : index
      %c0_14 = arith.constant 0 : index
      %19 = vector.load %arg10[%c0_13, %c0_14] : memref<8x32xf32, #tpu.memory_space<vmem>>, vector<8x32xf32>
      %c0_15 = arith.constant 0 : index
      %c0_16 = arith.constant 0 : index
      %c0_17 = arith.constant 0 : index
      %20 = vector.load %arg9[%c0_15, %c0_16, %c0_17] : memref<1x8x32xf32, #tpu.memory_space<vmem>>, vector<1x8x32xf32>
      %21 = vector.shape_cast %20 : vector<1x8x32xf32> to vector<8x32xf32>
      %22 = vector.shape_cast %19 : vector<8x32xf32> to vector<1x8x32xf32>
      tpu.vector_store %arg9[%c0_15, %c0_16, %c0_17], %22 {strides = array<i32>} : memref<1x8x32xf32, #tpu.memory_space<vmem>>, vector<1x8x32xf32>,
    } else {
    }
    return
  }
  func.func @transform_0(%arg0: i32, %arg1: i32, %arg2: i32, %arg3: i32, %arg4: i32) -> (i32, i32) {
    %c1_i32 = arith.constant 1 : i32
    %0 = arith.muli %arg0, %c1_i32 : i32
    %1 = arith.addi %0, %arg1 : i32
    %c0_i32 = arith.constant 0 : i32
    return %1, %arg4 : i32, i32
  }
  func.func @transform_1(%arg0: i32, %arg1: i32, %arg2: i32, %arg3: i32, %arg4: i32) -> (i32, i32, i32) {
    %c0_i32 = arith.constant 0 : i32
    return %arg2, %arg4, %arg3 : i32, i32, i32
  }
  func.func @transform_2(%arg0: i32, %arg1: i32, %arg2: i32, %arg3: i32, %arg4: i32) -> (i32, i32) {
    %c0_i32 = arith.constant 0 : i32
    return %arg1, %arg3 : i32, i32
  }
  func.func @transform_3(%arg0: i32, %arg1: i32, %arg2: i32, %arg3: i32, %arg4: i32) -> (i32, i32) {
    %c0_i32 = arith.constant 0 : i32
    return %arg1, %arg3 : i32, i32
  }
  func.func @transform_4(%arg0: i32, %arg1: i32, %arg2: i32, %arg3: i32, %arg4: i32) -> (i32, i32, i32) {
    %c1_i32 = arith.constant 1 : i32
    %0 = arith.muli %arg0, %c1_i32 : i32
    %1 = arith.addi %0, %arg1 : i32
    %c0_i32 = arith.constant 0 : i32
    return %arg2, %1, %arg3 : i32, i32, i32
  }
}

</mosaic_0001>

<llo_original>
// kernel: tpu_custom_call.1
$region0: #{tpu_custom_call.1}
  #allocation0 [shape = 'u32[]', space=smem, size = 0x4, offset = 0x4, fixed_abs, tag = 'smem constant byte address 0x4 - core index']
  #allocation1 [shape = 'u32[144,128]{1,0:T(1,128)}', space=vmem, size = 0x12000, scoped, tag = 'internal scratch']
  #allocation2 [shape = 'f32[8,32]{1,0:T(8,128)}', space=vmem, size = 0x1000, scoped, tag = 'scratch operand']
  %s0 = inlined_call_operand.hbm [shape: f32[16,32], index: 0, kind: input, shape index: {}]
  %s1 = inlined_call_operand.hbm [shape: f32[3,32,32], index: 1, kind: input, shape index: {}]
  %s2 = inlined_call_operand.hbm [shape: f32[8,32], index: 2, kind: input, shape index: {}]
  %s3 = inlined_call_operand.vmem [shape: f32[8,32], index: 3, kind: input, shape index: {}]
  %s4 = inlined_call_operand.hbm [shape: f32[3,16,32], index: 4, kind: output, shape index: {}]
  %s5 = sld [smem:[#allocation0]]
  $region73: #{tpu_custom_call.1} parent=0
    _
  %s7 = ssub.s32 1, %s5
  %s8 = scalar_select 0, %s7, %s5
  $region1: #{tpu_custom_call.1} parent=0
    #allocation3 [shape = 'u8[8192]{0}', space=vmem, size = 0x2000, scoped, tag = 'input window, operand 0']
    #allocation4 [shape = 's32[2]{0}', space=sflag, size = 0x8, scoped, tag = 'scoped memory for tpu_custom_call.1']
    #allocation5 [shape = 's32[2]{0}', space=sflag, size = 0x8, scoped, tag = 'scoped memory for tpu_custom_call.1']
    #allocation6 [shape = 'u8[32768]{0}', space=vmem, size = 0x8000, scoped, tag = 'input window, operand 1']
    #allocation7 [shape = 's32[2]{0}', space=sflag, size = 0x8, scoped, tag = 'scoped memory for tpu_custom_call.1']
    #allocation8 [shape = 'u8[4096]{0}', space=vmem, size = 0x1000, scoped, tag = 'input window, operand 2, single buffered']
    #allocation9 [shape = 'u8[8192]{0}', space=vmem, size = 0x2000, scoped, tag = 'output window, operand 0']
    %9 = vsyncpa [#allocation4], 0
    %s10 = scalar_lea.sflag [#allocation4], 1
    %11 = vsyncpa %s10, 0
    %12 = vsyncpa [#allocation7], 0
    %s13 = scalar_lea.sflag [#allocation7], 1
    %14 = vsyncpa %s13, 0
    %15 = vsyncpa [#allocation5], 0
    %s16 = scalar_lea.sflag [#allocation5], 1
    %17 = vsyncpa %s16, 0
    loop: start=0, step=1, limit=8
    $region2: #{tpu_custom_call.1} parent=1 // loop_pre_header
      _
    $region3: #{tpu_custom_call.1} parent=1 // loop_header
      %s19 = sphi 0, %s23
      %p20 = scmp.ge.s32.totalorder %s19, 8
      %s26 = sphi 0, %s59
      %s27 = sphi 0, %s55
      %s28 = sphi 0, %s51
      %s29 = sphi 0, %s47
      %s30 = sphi 0, %s43
      %s31 = sphi 0, %s26
      %s32 = sphi 0, %s27
      %s33 = sphi 0, %s28
      %s34 = sphi 0, %s29
      %s35 = sphi 0, %s30
      %s36 = sphi 0, %s31
      %s37 = sphi 0, %s32
      %s38 = sphi 0, %s33
      %s39 = sphi 0, %s34
      %s40 = sphi 0, %s35
      %s66 = sphi 0, %s68
      %s69 = sphi 0, %s66
      %s70 = sphi 0, %s69
      %s86 = sphi 0, %s70
      %s96 = sphi 0, %s98
      %s99 = sphi 0, %s96
      %s100 = sphi 0, %s99
      %s116 = sphi 0, %s100
      %s124 = sphi 0, %s126
      %s127 = sphi 0, %s124
      %s128 = sphi 0, %s127
      %s144 = sphi 0, %s128
      %s152 = sphi 0, %s154
      %s155 = sphi 0, %s152
      %s156 = sphi 0, %s155
      %s172 = sphi 0, %s156
      %s184 = sphi 0, %s186
      %s187 = sphi 0, %s184
      %s188 = sphi 0, %s187
      %s204 = sphi 0, %s188
    $region4: #{tpu_custom_call.1} parent=1 // loop_header_branch
      %22 = sbr.rel (%p20) target = $region8
    $region5: #{tpu_custom_call.1} parent=1 // loop_body
      %s24 = ssub.s32 %s19, 1
      %s25 = ssub.s32 %s19, 2
      %s41 = sadd.s32 1, %s30
      %p42 = scmp.ge.s32.totalorder %s41, 1
      %s43 = scalar_select %p42, 0, %s41
      %s44 = sadd.s32 1, %s29
      %s45 = scalar_select %p42, %s44, %s29
      %p46 = scmp.ge.s32.totalorder %s45, 1
      %s47 = scalar_select %p46, 0, %s45
      %s48 = sadd.s32 1, %s28
      %s49 = scalar_select %p46, %s48, %s28
      %p50 = scmp.ge.s32.totalorder %s49, 3
      %s51 = scalar_select %p50, 0, %s49
      %s52 = sadd.s32 1, %s27
      %s53 = scalar_select %p50, %s52, %s27
      %p54 = scmp.ge.s32.totalorder %s53, 1
      %s55 = scalar_select %p54, 0, %s53
      %s56 = sadd.s32 1, %s26
      %s57 = scalar_select %p54, %s56, %s26
      %p58 = scmp.ge.s32.totalorder %s57, 2
      %s59 = scalar_select %p58, 0, %s57
      %s60 = sadd.s32 %s26, %s27
      %s61 = sadd.s32 %s59, %s55
      %s62 = ssub.s32 %s60, %s61
      %s63 = ssub.s32 %s30, %s43
      %s64 = sor.u32 %s62, %s63
      %p65 = scmp.eq.s32.totalorder %s64, 0
      %s67 = sadd.s32 %s66, 1
      %s68 = scalar_select %p65, %s66, %s67
      %p71 = pneg %p65
      %p72 = scmp.eq.s32.totalorder %s19, 5
      %p73 = por %p71, %p72
      %p74 = scmp.ne.s32.totalorder %s66, %s69
      %p75 = scmp.eq.s32.totalorder %s19, 0
      %p76 = por %p74, %p75
      %p77 = scmp.ne.s32.totalorder %s66, %s69
      %p78 = scmp.eq.s32.totalorder %s24, 5
      %p79 = por %p77, %p78
      %p80 = scmp.ne.s32.totalorder %s69, %s70
      %p81 = scmp.eq.s32.totalorder %s24, 0
      %p82 = por %p80, %p81
      %p83 = scmp.ne.s32.totalorder %s69, %s70
      %p84 = scmp.eq.s32.totalorder %s25, 5
      %p85 = por %p83, %p84
      %p87 = scmp.ne.s32.totalorder %s70, %s86
      %p88 = scmp.eq.s32.totalorder %s25, 0
      %p89 = por %p87, %p88
      %s90 = ssub.s32 %s28, %s51
      %s91 = ssub.s32 %s30, %s43
      %s92 = sor.u32 %s90, %s91
      %s93 = ssub.s32 %s29, %s47
      %s94 = sor.u32 %s92, %s93
      %p95 = scmp.eq.s32.totalorder %s94, 0
      %s97 = sadd.s32 %s96, 1
      %s98 = scalar_select %p95, %s96, %s97
      %p101 = pneg %p95
      %p102 = scmp.eq.s32.totalorder %s19, 5
      %p103 = por %p101, %p102
      %p104 = scmp.ne.s32.totalorder %s96, %s99
      %p105 = scmp.eq.s32.totalorder %s19, 0
      %p106 = por %p104, %p105
      %p107 = scmp.ne.s32.totalorder %s96, %s99
      %p108 = scmp.eq.s32.totalorder %s24, 5
      %p109 = por %p107, %p108
      %p110 = scmp.ne.s32.totalorder %s99, %s100
      %p111 = scmp.eq.s32.totalorder %s24, 0
      %p112 = por %p110, %p111
      %p113 = scmp.ne.s32.totalorder %s99, %s100
      %p114 = scmp.eq.s32.totalorder %s25, 5
      %p115 = por %p113, %p114
      %p117 = scmp.ne.s32.totalorder %s100, %s116
      %p118 = scmp.eq.s32.totalorder %s25, 0
      %p119 = por %p117, %p118
      %s120 = ssub.s32 %s27, %s55
      %s121 = ssub.s32 %s29, %s47
      %s122 = sor.u32 %s120, %s121
      %p123 = scmp.eq.s32.totalorder %s122, 0
      %s125 = sadd.s32 %s124, 1
      %s126 = scalar_select %p123, %s124, %s125
      %p129 = pneg %p123
      %p130 = scmp.eq.s32.totalorder %s19, 5
      %p131 = por %p129, %p130
      %p132 = scmp.ne.s32.totalorder %s124, %s127
      %p133 = scmp.eq.s32.totalorder %s19, 0
      %p134 = por %p132, %p133
      %p135 = scmp.ne.s32.totalorder %s124, %s127
      %p136 = scmp.eq.s32.totalorder %s24, 5
      %p137 = por %p135, %p136
      %p138 = scmp.ne.s32.totalorder %s127, %s128
      %p139 = scmp.eq.s32.totalorder %s24, 0
      %p140 = por %p138, %p139
      %p141 = scmp.ne.s32.totalorder %s127, %s128
      %p142 = scmp.eq.s32.totalorder %s25, 5
      %p143 = por %p141, %p142
      %p145 = scmp.ne.s32.totalorder %s128, %s144
      %p146 = scmp.eq.s32.totalorder %s25, 0
      %p147 = por %p145, %p146
      %s148 = ssub.s32 %s27, %s55
      %s149 = ssub.s32 %s29, %s47
      %s150 = sor.u32 %s148, %s149
      %p151 = scmp.eq.s32.totalorder %s150, 0
      %s153 = sadd.s32 %s152, 1
      %s154 = scalar_select %p151, %s152, %s153
      %p157 = pneg %p151
      %p158 = scmp.eq.s32.totalorder %s19, 5
      %p159 = por %p157, %p158
      %p160 = scmp.ne.s32.totalorder %s152, %s155
      %p161 = scmp.eq.s32.totalorder %s19, 0
      %p162 = por %p160, %p161
      %p163 = scmp.ne.s32.totalorder %s152, %s155
      %p164 = scmp.eq.s32.totalorder %s24, 5
      %p165 = por %p163, %p164
      %p166 = scmp.ne.s32.totalorder %s155, %s156
      %p167 = scmp.eq.s32.totalorder %s24, 0
      %p168 = por %p166, %p167
      %p169 = scmp.ne.s32.totalorder %s155, %s156
      %p170 = scmp.eq.s32.totalorder %s25, 5
      %p171 = por %p169, %p170
      %p173 = scmp.ne.s32.totalorder %s156, %s172
      %p174 = scmp.eq.s32.totalorder %s25, 0
      %p175 = por %p173, %p174
      %s176 = sadd.s32 %s26, %s27
      %s177 = sadd.s32 %s59, %s55
      %s178 = ssub.s32 %s28, %s51
      %s179 = ssub.s32 %s176, %s177
      %s180 = sor.u32 %s178, %s179
      %s181 = ssub.s32 %s29, %s47
      %s182 = sor.u32 %s180, %s181
      %p183 = scmp.eq.s32.totalorder %s182, 0
      %s185 = sadd.s32 %s184, 1
      %s186 = scalar_select %p183, %s184, %s185
      %p189 = pneg %p183
      %p190 = scmp.eq.s32.totalorder %s19, 5
      %p191 = por %p189, %p190
      %p192 = scmp.ne.s32.totalorder %s184, %s187
      %p193 = scmp.eq.s32.totalorder %s19, 0
      %p194 = por %p192, %p193
      %p195 = scmp.ne.s32.totalorder %s184, %s187
      %p196 = scmp.eq.s32.totalorder %s24, 5
      %p197 = por %p195, %p196
      %p198 = scmp.ne.s32.totalorder %s187, %s188
      %p199 = scmp.eq.s32.totalorder %s24, 0
      %p200 = por %p198, %p199
      %p201 = scmp.ne.s32.totalorder %s187, %s188
      %p202 = scmp.eq.s32.totalorder %s25, 5
      %p203 = por %p201, %p202
      %p205 = scmp.ne.s32.totalorder %s188, %s204
      %p206 = scmp.eq.s32.totalorder %s25, 0
      %p207 = por %p205, %p206
      %p208 = scmp.le.s32.totalorder 1, %s19
      %p209 = scmp.lt.s32.totalorder %s19, 7
      %p210 = pnand %p208, %p209
      %p211 = pneg %p210
      // Predicated region
      $region9: #{tpu_custom_call.1} parent=5 // pred_check
        _
      $region10: #{tpu_custom_call.1} parent=5 // pred_check_branch
        %213 = sbr.rel (%p210) target = $region12
      $region11: #{tpu_custom_call.1} parent=5 // pred_region
        %s214 = ssub.s32 %s19, 1
        // Predicated region
        $region13: #{tpu_custom_call.1} parent=11 // pred_check
          %p215 = pneg %p140
        $region14: #{tpu_custom_call.1} parent=11 // pred_check_branch
          %217 = sbr.rel (%p215) target = $region16
        $region15: #{tpu_custom_call.1} parent=11 // pred_region
          %s219 = ssub.s32 128, 128
          %220 = vsyncadd [#allocation7], %s219
          %s221 = sadd.s32 %s34, %s32
          %s222 = smul.addr %s221, 128
          %s223 = scalar_lea.hbm %s2, %s222
          %s225 = sshll.u32 [#allocation8], 4
          %s226 = int_to_ptr.vmem [resolvable:$true] %s225
          %228 = dma.hbm_to_vmem [thread:$0]  %s223, 128, %s226, [#allocation7]
        $region16: #{tpu_custom_call.1} parent=11 // pred_fallthru
          _
        // Predicated region
        $region17: #{tpu_custom_call.1} parent=11 // pred_check
          %p229 = pneg %p168
        $region18: #{tpu_custom_call.1} parent=11 // pred_check_branch
          %231 = sbr.rel (%p229) target = $region20
        $region19: #{tpu_custom_call.1} parent=11 // pred_region
          %p232 = scmp.lt.s32.totalorder %s32, 0
          %s233 = scalar_select %p232, %s32, 0
          %p234 = scmp.lt.s32.totalorder %s34, 0
          %s235 = scalar_select %p234, %s34, 0
          %s236 = sadd.s32 %s235, %s233
          %s237 = smul.addr %s236, 8
          %s238 = scalar_lea.vmem %s3, %s237
        $region20: #{tpu_custom_call.1} parent=11 // pred_fallthru
          _
      $region12: #{tpu_custom_call.1} parent=5 // pred_fallthru
        _
      %p239 = scmp.lt.s32.totalorder %s19, 6
      // Predicated region
      $region21: #{tpu_custom_call.1} parent=5 // pred_check
        %p240 = pneg %p239
      $region22: #{tpu_custom_call.1} parent=5 // pred_check_branch
        %242 = sbr.rel (%p240) target = $region24
      $region23: #{tpu_custom_call.1} parent=5 // pred_region
        // Predicated region
        $region25: #{tpu_custom_call.1} parent=23 // pred_check
          %p243 = pneg %p76
        $region26: #{tpu_custom_call.1} parent=23 // pred_check_branch
          %245 = sbr.rel (%p243) target = $region28
        $region27: #{tpu_custom_call.1} parent=23 // pred_region
          %s246 = sand.u32 %s66, 1
          %s247 = scalar_lea.sflag [#allocation4], %s246
          %s248 = sand.u32 %s66, 1
          %s249 = smul.addr %s248, 8
          %s250 = scalar_lea.vmem [#allocation3], %s249
          %s251 = sadd.s32 %s26, %s27
          %s253 = ssub.s32 128, 128
          %254 = vsyncadd %s247, %s253
          %s255 = sadd.s32 %s30, %s251
          %s256 = smul.addr %s255, 128
          %s257 = scalar_lea.hbm %s0, %s256
          %s259 = sshll.u32 %s250, 4
          %s260 = int_to_ptr.vmem [resolvable:$true] %s259
          %262 = dma.hbm_to_vmem [thread:$0]  %s257, 128, %s260, %s247
        $region28: #{tpu_custom_call.1} parent=23 // pred_fallthru
          _
        // Predicated region
        $region29: #{tpu_custom_call.1} parent=23 // pred_check
          %p263 = pneg %p106
        $region30: #{tpu_custom_call.1} parent=23 // pred_check_branch
          %265 = sbr.rel (%p263) target = $region32
        $region31: #{tpu_custom_call.1} parent=23 // pred_region
          %s266 = sand.u32 %s19, 1
          %s267 = scalar_lea.sflag [#allocation7], %s266
          %s268 = sand.u32 %s96, 1
          %s269 = smul.addr %s268, 32
          %s270 = scalar_lea.vmem [#allocation6], %s269
          %s271 = smul.u32 4, %s30
          %s273 = ssub.s32 512, 512
          %274 = vsyncadd %s267, %s273
          %s275 = sadd.s32 %s29, %s271
          %s276 = smul.addr %s28, 4
          %s277 = sadd.s32 %s275, %s276
          %s278 = smul.addr %s277, 128
          %s279 = scalar_lea.hbm %s1, %s278
          %s280 = sshll.u32 %s270, 4
          %s281 = int_to_ptr.vmem [resolvable:$true] %s280
          %286 = dma.hbm_to_vmem [thread:$0]  %s279, 512, %s281, %s267, 128, 128, 8
        $region32: #{tpu_custom_call.1} parent=23 // pred_fallthru
          _
      $region24: #{tpu_custom_call.1} parent=5 // pred_fallthru
        _
      %p287 = scmp.le.s32.totalorder 1, %s19
      %p288 = scmp.lt.s32.totalorder %s19, 7
      %p289 = pnand %p287, %p288
      %p290 = pneg %p289
      // Predicated region
      $region33: #{tpu_custom_call.1} parent=5 // pred_check
        _
      $region34: #{tpu_custom_call.1} parent=5 // pred_check_branch
        %292 = sbr.rel (%p289) target = $region36
      $region35: #{tpu_custom_call.1} parent=5 // pred_region
        %s293 = ssub.s32 %s19, 1
        %s294 = sand.u32 %s69, 1
        %s295 = scalar_lea.sflag [#allocation4], %s294
        %s296 = sand.u32 %s69, 1
        %s297 = smul.addr %s296, 8
        %s298 = scalar_lea.vmem [#allocation3], %s297
        // Predicated region
        $region37: #{tpu_custom_call.1} parent=35 // pred_check
          %p299 = pneg %p82
        $region38: #{tpu_custom_call.1} parent=35 // pred_check_branch
          %301 = sbr.rel (%p299) target = $region40
        $region39: #{tpu_custom_call.1} parent=35 // pred_region
          %302 = dma.done %s295, 128
        $region40: #{tpu_custom_call.1} parent=35 // pred_fallthru
          _
        %s303 = sand.u32 %s24, 1
        %s304 = scalar_lea.sflag [#allocation7], %s303
        %s305 = sand.u32 %s99, 1
        %s306 = smul.addr %s305, 32
        %s307 = scalar_lea.vmem [#allocation6], %s306
        // Predicated region
        $region41: #{tpu_custom_call.1} parent=35 // pred_check
          %p308 = pneg %p112
        $region42: #{tpu_custom_call.1} parent=35 // pred_check_branch
          %310 = sbr.rel (%p308) target = $region44
        $region43: #{tpu_custom_call.1} parent=35 // pred_region
          %311 = dma.done %s304, 512
        $region44: #{tpu_custom_call.1} parent=35 // pred_fallthru
          _
        // Predicated region
        $region45: #{tpu_custom_call.1} parent=35 // pred_check
          %p312 = pneg %p140
        $region46: #{tpu_custom_call.1} parent=35 // pred_check_branch
          %314 = sbr.rel (%p312) target = $region48
        $region47: #{tpu_custom_call.1} parent=35 // pred_region
          %315 = dma.done [#allocation7], 128
        $region48: #{tpu_custom_call.1} parent=35 // pred_fallthru
          _
        %s316 = sand.u32 %s69, 1
        %s317 = scalar_lea.sflag [#allocation4], %s316
        %s318 = sand.u32 %s69, 1
        %s319 = smul.addr %s318, 8
        %s320 = scalar_lea.vmem [#allocation3], %s319
        %p321 = pneg %p82
        %p322 = pneg %p79
        %s323 = sand.u32 %s24, 1
        %s324 = scalar_lea.sflag [#allocation7], %s323
        %s325 = sand.u32 %s99, 1
        %s326 = smul.addr %s325, 32
        %s327 = scalar_lea.vmem [#allocation6], %s326
        %p328 = pneg %p112
        %p329 = pneg %p109
        %p330 = pneg %p140
        %p331 = pneg %p137
        %p332 = scmp.lt.s32.totalorder %s32, 0
        %s333 = scalar_select %p332, %s32, 0
        %p334 = scmp.lt.s32.totalorder %s34, 0
        %s335 = scalar_select %p334, %s34, 0
        %s336 = sadd.s32 %s335, %s333
        %s337 = smul.addr %s336, 8
        %s338 = scalar_lea.vmem %s3, %s337
        %p339 = pneg %p168
        %p340 = pneg %p165
        %p341 = pneg %p200
        %p342 = pneg %p197
        %s343 = sand.u32 %s187, 1
        %s344 = scalar_lea.sflag [#allocation5], %s343
        %s345 = sand.u32 %s187, 1
        %s346 = smul.addr %s345, 8
        %s347 = scalar_lea.vmem [#allocation9], %s346
        %s348 = sadd.s32 %s31, %s32
        %s349 = smul.u32 4, %s35
        %p350 = scmp.lt.s32.totalorder %s32, 0
        %s351 = scalar_select %p350, %s32, 0
        %p352 = scmp.lt.s32.totalorder %s34, 0
        %s353 = scalar_select %p352, %s34, 0
        %s354 = sadd.s32 %s353, %s351
        %s355 = smul.addr %s354, 8
        %s356 = scalar_lea.vmem %s3, %s355
        %s357 = sadd.s32 %s31, %s32
        %p358 = scmp.eq.s32.totalorder %s35, 0
        // Predicated region
        $region49: #{tpu_custom_call.1} parent=35 // pred_check
          %p359 = pneg %p358
        $region50: #{tpu_custom_call.1} parent=35 // pred_check_branch
          %361 = sbr.rel (%p359) target = $region52
        $region51: #{tpu_custom_call.1} parent=35 // pred_region
          %vm362 = vcmask 261120
          %363 = vst.msk [vmem:[#allocation2] sm:$0xff] %vm362, 0.0
        $region52: #{tpu_custom_call.1} parent=35 // pred_fallthru
          _
        %v364 = vld [vmem:[#allocation2] sm:$0xff]
        %v365 = vld [vmem:[%s298] sm:$0xff]
        %v366 = vld [vmem:[%s307] sm:$0xff]
        %v367 = vld [vmem:[%s307 + $0x8] sm:$0xff]
        %v368 = vld [vmem:[%s307 + $0x10] sm:$0xff]
        %v369 = vld [vmem:[%s307 + $0x18] sm:$0xff]
        %vm370 = vcmask 261120
        %v372 = vsel %vm370, %v365, 0
        %374 = vmatprep.subr.mxu0 0.0
        %375 = vmatpush1.msra.mxu0 %v366
        %376 = vmatprep.subr.mxu0 0.0
        %377 = vmatpush1.msra.mxu0 %v367
        %378 = vmatprep.subr.mxu0 0.0
        %379 = vmatpush1.msra.mxu0 %v368
        %380 = vmatprep.subr.mxu0 0.0
        %381 = vmatpush1.msra.mxu0 %v369
        %382 = vmatprep.subr.mxu0 0.0
        %383 = vmatpush1.msra.mxu0 0.0
        %384 = vmatprep.subr.mxu0 0.0
        %385 = vmatpush1.msra.mxu0 0.0
        %386 = vmatprep.subr.mxu0 0.0
        %387 = vmatpush1.msra.mxu0 0.0
        %388 = vmatprep.subr.mxu0 0.0
        %389 = vmatpush1.msra.mxu0 0.0
        %390 = vmatprep.subr.mxu0 0.0
        %391 = vmatpush1.msra.mxu0 0.0
        %392 = vmatprep.subr.mxu0 0.0
        %393 = vmatpush1.msra.mxu0 0.0
        %394 = vmatprep.subr.mxu0 0.0
        %395 = vmatpush1.msra.mxu0 0.0
        %396 = vmatprep.subr.mxu0 0.0
        %397 = vmatpush1.msra.mxu0 0.0
        %398 = vmatprep.subr.mxu0 0.0
        %399 = vmatpush1.msra.mxu0 0.0
        %400 = vmatprep.subr.mxu0 0.0
        %401 = vmatpush1.msra.mxu0 0.0
        %402 = vmatprep.subr.mxu0 0.0
        %403 = vmatpush1.msra.mxu0 0.0
        %404 = vmatprep.subr.mxu0 0.0
        %405 = vmatpush1.msra.mxu0 0.0
        %406 = vmatprep.subr.mxu0 0.0
        %407 = vmatpush1.msra.mxu0 0.0
        %408 = vmatprep.subr.mxu0 0.0
        %409 = vmatpush1.msra.mxu0 0.0
        %410 = vmatprep.subr.mxu0 0.0
        %411 = vmatpush1.msra.mxu0 0.0
        %412 = vmatprep.subr.mxu0 0.0
        %413 = vmatpush1.msra.mxu0 0.0
        %414 = vmatprep.subr.mxu0 0.0
        %415 = vmatpush1.msra.mxu0 0.0
        %416 = vmatprep.subr.mxu0 0.0
        %417 = vmatpush1.msra.mxu0 0.0
        %418 = vmatprep.subr.mxu0 0.0
        %419 = vmatpush1.msra.mxu0 0.0
        %420 = vmatprep.subr.mxu0 0.0
        %421 = vmatpush1.msra.mxu0 0.0
        %422 = vmatprep.subr.mxu0 0.0
        %423 = vmatpush1.msra.mxu0 0.0
        %424 = vmatprep.subr.mxu0 0.0
        %425 = vmatpush1.msra.mxu0 0.0
        %426 = vmatprep.subr.mxu0 0.0
        %427 = vmatpush1.msra.mxu0 0.0
        %428 = vmatprep.subr.mxu0 0.0
        %429 = vmatpush1.msra.mxu0 0.0
        %430 = vmatprep.subr.mxu0 0.0
        %431 = vmatpush1.msra.mxu0 0.0
        %432 = vmatprep.subr.mxu0 0.0
        %433 = vmatpush1.msra.mxu0 0.0
        %434 = vmatprep.subr.mxu0 0.0
        %435 = vmatpush1.msra.mxu0 0.0
        %436 = vmatprep.subr.mxu0 0.0
        %437 = vmatpush1.msra.mxu0 0.0
        %438 = vmatprep.mubr.f32.mxu0 0.0
        %439 = vmatmul.mubr.f32.gmra.mrb[0].mxu0 %v372
        %v440 = vpop.f32.mrb[0].mxu0
        %v441 = vadd.f32 0.0, %v440
        %v442 = vpop.f32.mrb[0].mxu0
        %443 = vdwg.mxu0
        %v444 = vadd.f32 %v364, %v441
        %445 = vst.msk [vmem:[#allocation2] sm:$0xff] %vm370, %v444
        %p446 = scmp.lt.s32.totalorder %s33, 2
        %p447 = pnand %p358, %p446
        %p448 = pneg %p447
        // Predicated region
        $region53: #{tpu_custom_call.1} parent=35 // pred_check
          _
        $region54: #{tpu_custom_call.1} parent=35 // pred_check_branch
          %450 = sbr.rel (%p447) target = $region56
        $region55: #{tpu_custom_call.1} parent=35 // pred_region
          %v451 = vld [vmem:[#allocation2] sm:$0xff]
          %v452 = vsub.f32 0.0, %v451
          %454 = vrot.lane.b32.xlu0 %v452, 124
          %v455 = vpop.permute.xlu0 %454
          %458 = vrot.lane.b32.xlu0 %v451, 4
          %v459 = vpop.permute.xlu0 %458
          %vm461 = vcmask 31744
          %v462 = vsel %vm461, %v455, %v459
          %vm463 = vcmask 64512
          %v464 = vsel %vm463, %v462, %v455
          %vm465 = vcmask 97280
          %v466 = vsel %vm465, %v464, %v459
          %vm467 = vcmask 130048
          %v468 = vsel %vm467, %v466, %v455
          %vm469 = vcmask 162816
          %v470 = vsel %vm469, %v468, %v459
          %vm471 = vcmask 195584
          %v472 = vsel %vm471, %v470, %v455
          %vm473 = vcmask 228352
          %v474 = vsel %vm473, %v472, %v459
          %v475 = vld [vmem:[#allocation8] sm:$0xff]
          %v476 = vmul.f32 %v451, %v475
          %v477 = vld [vmem:[%s356] sm:$0xff]
          %v478 = vmul.f32 %v474, %v477
          %v479 = vadd.f32 %v476, %v478
          %480 = vst.msk [vmem:[%s347] sm:$0xff] %vm370, %v479
        $region56: #{tpu_custom_call.1} parent=35 // pred_fallthru
          _
        %p481 = scmp.eq.s32.totalorder %s33, 2
        %p482 = pnand %p358, %p481
        %p483 = pneg %p482
        // Predicated region
        $region57: #{tpu_custom_call.1} parent=35 // pred_check
          _
        $region58: #{tpu_custom_call.1} parent=35 // pred_check_branch
          %485 = sbr.rel (%p482) target = $region60
        $region59: #{tpu_custom_call.1} parent=35 // pred_region
          %v486 = vld [vmem:[#allocation2] sm:$0xff]
          %487 = vst.msk [vmem:[%s347] sm:$0xff] %vm370, %v486
        $region60: #{tpu_custom_call.1} parent=35 // pred_fallthru
          _
        %s488 = sand.u32 %s187, 1
        %s489 = scalar_lea.sflag [#allocation5], %s488
        %s490 = sand.u32 %s187, 1
        %s491 = smul.addr %s490, 8
        %s492 = scalar_lea.vmem [#allocation9], %s491
        // Predicated region
        $region61: #{tpu_custom_call.1} parent=35 // pred_check
          %p493 = pneg %p197
        $region62: #{tpu_custom_call.1} parent=35 // pred_check_branch
          %495 = sbr.rel (%p493) target = $region64
        $region63: #{tpu_custom_call.1} parent=35 // pred_region
          %s496 = sadd.s32 %s31, %s32
          %s498 = ssub.s32 128, 128
          %499 = vsyncadd %s489, %s498
          %s500 = sadd.s32 %s34, %s496
          %s501 = smul.addr %s33, 2
          %s502 = sadd.s32 %s500, %s501
          %s503 = smul.addr %s502, 128
          %s504 = scalar_lea.hbm %s4, %s503
          %s506 = sshll.u32 %s492, 4
          %s507 = int_to_ptr.vmem [resolvable:$true] %s506
          %509 = dma.vmem_to_hbm [thread:$0]  %s507, 128, %s504, %s489
        $region64: #{tpu_custom_call.1} parent=35 // pred_fallthru
          _
      $region36: #{tpu_custom_call.1} parent=5 // pred_fallthru
        _
      %p510 = scmp.le.s32.totalorder 2, %s19
      // Predicated region
      $region65: #{tpu_custom_call.1} parent=5 // pred_check
        %p511 = pneg %p510
      $region66: #{tpu_custom_call.1} parent=5 // pred_check_branch
        %513 = sbr.rel (%p511) target = $region68
      $region67: #{tpu_custom_call.1} parent=5 // pred_region
        %s514 = ssub.s32 %s19, 2
        // Predicated region
        $region69: #{tpu_custom_call.1} parent=67 // pred_check
          %p515 = pneg %p203
        $region70: #{tpu_custom_call.1} parent=67 // pred_check_branch
          %517 = sbr.rel (%p515) target = $region72
        $region71: #{tpu_custom_call.1} parent=67 // pred_region
          %s518 = sand.u32 %s188, 1
          %s519 = scalar_lea.sflag [#allocation5], %s518
          %s520 = sand.u32 %s188, 1
          %s521 = smul.addr %s520, 8
          %s522 = scalar_lea.vmem [#allocation9], %s521
          %523 = dma.done %s519, 128
        $region72: #{tpu_custom_call.1} parent=67 // pred_fallthru
          _
      $region68: #{tpu_custom_call.1} parent=5 // pred_fallthru
        _
    $region6: #{tpu_custom_call.1} parent=1 // loop_footer
      %s23 = sadd.s32 1, %s19
    $region7: #{tpu_custom_call.1} parent=1 // loop_footer_branch
      %18 = sbr.rel target = $region3
    $region8: #{tpu_custom_call.1} parent=1 // loop_exit
      _
    %524 = vsyncpa [#allocation4], 1
    %s525 = scalar_lea.sflag [#allocation4], 1
    %526 = vsyncpa %s525, 1
    %527 = vsyncpa [#allocation7], 1
    %s528 = scalar_lea.sflag [#allocation7], 1
    %529 = vsyncpa %s528, 1
    %530 = vsyncpa [#allocation5], 1
    %s531 = scalar_lea.sflag [#allocation5], 1
    %532 = vsyncpa %s531, 1

</llo_original>
